<compile_context>
chip_gen: v7x
topology: tpu7x:2x2x1
jax: 0.10.0
libtpu: 0.0.40
codegen_flags: <defaults>
</compile_context>

<pallas_src>
import jax
import jax.numpy as jnp
from jax.experimental import pallas as pl
from jax.experimental.pallas import tpu as pltpu

_LANES = 128
_SUBLANES = 8
_MAX_TILE_ROWS = 4096                    # (4096,128) f32 tile = 2 MiB per buffer
_VMEM_LIMIT_BYTES = 32 * 1024 * 1024     # safe on v5e/v6e (128 MiB) and v7x (64 MiB)


def _num_tensorcores():
    """Best-effort TensorCores-per-chip; defaults to 1 (safe on every generation)."""
    try:
        info = pltpu.get_tpu_info()
        for attr in ("num_cores", "core_count", "num_tensorcores",
                     "tensorcores_per_chip", "cores_per_chip"):
            v = getattr(info, attr, None)
            if isinstance(v, int) and v >= 1:
                return v
    except Exception:
        pass
    return 1


def _pow(x, exponent):
    """x ** exponent; unrolled into plain VPU multiplies for small integer exponents."""
    e = float(exponent)
    if e.is_integer() and 0.0 <= e <= 16.0:
        n = int(e)
        if n == 0:
            return jnp.ones_like(x)
        result = None
        base = x
        while n:
            if n & 1:
                result = base if result is None else result * base
            n >>= 1
            if n:
                base = base * base
        return result
    # Generic fallback (EUP exp/log); NaN for negative bases, same as the reference.
    return x ** jnp.float32(e)


def _elementwise_loss(p, t, alpha, gamma):
    """Gaussian focal loss, single-log select form (exactly one branch live per elem)."""
    eps = 1e-12
    is_pos = t == 1.0
    x = jnp.where(is_pos, p, 1.0 - p)
    coef = jnp.where(is_pos, _pow(1.0 - p, alpha), _pow(p, alpha) * _pow(1.0 - t, gamma))
    return -jnp.log(x + eps) * coef


def _make_sum_kernel(alpha, gamma, nvalid, tile_rows, covered_rows, has_weight):
    """Grid (num_cores, steps): accumulate an (8,128) partial directly into out_ref."""
    has_padding = covered_rows * _LANES > nvalid
    full_rows = nvalid // _LANES      # rows that are entirely valid
    rem = nvalid % _LANES             # valid lanes in the first partially-valid row
    groups = tile_rows // _SUBLANES

    def kernel(*refs):
        if has_weight:
            pred_ref, tgt_ref, w_ref, out_ref = refs
        else:
            pred_ref, tgt_ref, out_ref = refs
            w_ref = None

        c = pl.program_id(0)
        i = pl.program_id(1)
        ns = pl.num_programs(1)

        @pl.when(i == 0)
        def _():
            out_ref[...] = jnp.zeros_like(out_ref)

        p = pred_ref[...].astype(jnp.float32)
        t = tgt_ref[...].astype(jnp.float32)
        loss = _elementwise_loss(p, t, alpha, gamma)
        if w_ref is not None:
            loss = loss * w_ref[...].astype(jnp.float32)

        def accumulate(x):
            # Pure VPU vreg adds; accumulator is the resident (1,8,128) output block.
            out_ref[0] += x.reshape(groups, _SUBLANES, _LANES).sum(axis=0)

        if has_padding:
            block_idx = c * ns + i
            needs_mask = (block_idx + 1) * tile_rows > full_rows

            @pl.when(jnp.logical_not(needs_mask))
            def _():
                accumulate(loss)

            @pl.when(needs_mask)
            def _():
                # Mask ragged / duplicate / partially-valid rows. This is load-bearing:
                # Pallas edge blocks contain garbage (no wrapper-side zero padding).
                rows_, cols_ = loss.shape
                row_idx = jax.lax.broadcasted_iota(jnp.int32, (rows_, cols_), 0)
                col_idx = jax.lax.broadcasted_iota(jnp.int32, (rows_, cols_), 1)
                grow = block_idx * tile_rows + row_idx
                valid = grow < full_rows
                if rem:
                    valid = jnp.logical_or(
                        valid, jnp.logical_and(grow == full_rows, col_idx < rem))
                accumulate(jnp.where(valid, loss, 0.0))
        else:
            accumulate(loss)

    return kernel


def _make_elem_kernel(alpha, gamma, has_weight):
    """Kernel that writes the elementwise loss (for reduction='none')."""

    def kernel(*refs):
        if has_weight:
            pred_ref, tgt_ref, w_ref, out_ref = refs
        else:
            pred_ref, tgt_ref, out_ref = refs
            w_ref = None
        p = pred_ref[...].astype(jnp.float32)
        t = tgt_ref[...].astype(jnp.float32)
        loss = _elementwise_loss(p, t, alpha, gamma)
        if w_ref is not None:
            loss = loss * w_ref[...].astype(jnp.float32)
        out_ref[...] = loss

    return kernel


def _slab_dtype(dtype):
    dt = jnp.dtype(dtype)
    if dt in (jnp.dtype(jnp.float32), jnp.dtype(jnp.bfloat16), jnp.dtype(jnp.float16)):
        return dt
    return jnp.dtype(jnp.float32)


def _sublane_multiple(*dtypes):
    """Minimum sublane tile multiple across the slab dtypes (8 f32, 16 for 16-bit)."""
    m = _SUBLANES
    for d in dtypes:
        itemsize = jnp.dtype(d).itemsize
        m = max(m, _SUBLANES * (4 // max(itemsize, 1)))
    return m


def _to_slab(x, rows):
    """Flatten into a (rows, 128) slab in the input's (float) dtype; pad < 128 elems."""
    flat = jnp.ravel(x)
    dt = _slab_dtype(flat.dtype)
    if flat.dtype != dt:
        flat = flat.astype(dt)
    pad = rows * _LANES - flat.shape[0]
    if pad > 0:                      # at most _LANES - 1 elements
        flat = jnp.pad(flat, (0, pad))
    return flat.reshape(rows, _LANES)


def _choose_tiling(n, sub_mult):
    """Returns (rows, tile, blocks): rows is the exact slab height (no tile round-up)."""
    rows = pl.cdiv(n, _LANES)
    tile = min(_MAX_TILE_ROWS, pl.cdiv(rows, sub_mult) * sub_mult)
    tile = max(tile, sub_mult)
    blocks = pl.cdiv(rows, tile)
    return rows, tile, blocks


def gaussian_focal_loss_tpu(pred, target, weight=None, reduction='mean',
                            avg_factor=None, alpha=2.0, gamma=4.0):
    """Pallas-backed gaussian_focal_loss with weight/reduction/avg_factor semantics."""
    pred = jnp.asarray(pred)
    target = jnp.asarray(target)
    assert pred.shape == target.shape
    n = int(pred.size)
    out_dtype = pred.dtype if jnp.issubdtype(pred.dtype, jnp.floating) else jnp.float32

    # Scalar weights never touch the kernel: w * sum(loss) == sum(w * loss).
    scalar_weight = None
    elem_weight = None
    if weight is not None:
        w = jnp.asarray(weight)
        if w.size == 1:
            scalar_weight = w.astype(jnp.float32).reshape(())
        else:
            # TODO(synk): small broadcastable weights (e.g. per-channel) could be kept
            # in SMEM instead of materializing a full-size slab (saves ~50% HBM reads).
            elem_weight = jnp.broadcast_to(w, pred.shape)
    has_weight = elem_weight is not None

    slab_dtypes = [_slab_dtype(pred.dtype), _slab_dtype(target.dtype)]
    if has_weight:
        slab_dtypes.append(_slab_dtype(elem_weight.dtype))
    sub_mult = _sublane_multiple(*slab_dtypes)

    rows, tile, blocks = _choose_tiling(n, sub_mult)

    pred_s = _to_slab(pred, rows)
    tgt_s = _to_slab(target, rows)
    inputs = [pred_s, tgt_s]
    if has_weight:
        inputs.append(_to_slab(elem_weight, rows))

    if reduction == 'none':
        # Matches weight_reduce_loss: elementwise result (avg_factor has no effect).
        tile_spec = pl.BlockSpec((tile, _LANES), lambda i: (i, 0))
        out = pl.pallas_call(
            _make_elem_kernel(alpha, gamma, has_weight),
            out_shape=jax.ShapeDtypeStruct((rows, _LANES), jnp.float32),
            grid_spec=pltpu.PrefetchScalarGridSpec(
                num_scalar_prefetch=0,
                grid=(blocks,),
                in_specs=[tile_spec] * len(inputs),
                out_specs=tile_spec,
            ),
            compiler_params=pltpu.CompilerParams(
                dimension_semantics=("parallel",),
                vmem_limit_bytes=_VMEM_LIMIT_BYTES),
        )(*inputs)
        if rows * _LANES == n:
            out = out.reshape(pred.shape)
        else:
            out = out.reshape(-1)[:n].reshape(pred.shape)
        if scalar_weight is not None:
            out = out * scalar_weight
        return out.astype(out_dtype)

    if avg_factor is not None and reduction == 'sum':
        raise ValueError('avg_factor can not be used with reduction="sum"')

    # Shard the reduction across TensorCores only when the chip actually has >1.
    nc = min(_num_tensorcores(), 2)
    nc = nc if (nc > 1 and blocks >= nc) else 1
    steps = pl.cdiv(blocks, nc)
    covered_rows = tile * nc * steps
    last_block = blocks - 1

    def in_map(c, i):
        # Clamp duplicate (round-up) blocks onto the last real block; the kernel's
        # mask path zeroes their contribution via the logical block index.
        return (jnp.minimum(c * steps + i, last_block), 0)

    in_spec = pl.BlockSpec((tile, _LANES), in_map)
    out_spec = pl.BlockSpec((1, _SUBLANES, _LANES), lambda c, i: (c, 0, 0))

    partials = pl.pallas_call(
        _make_sum_kernel(alpha, gamma, n, tile, covered_rows, has_weight),
        out_shape=jax.ShapeDtypeStruct((nc, _SUBLANES, _LANES), jnp.float32),
        grid_spec=pltpu.PrefetchScalarGridSpec(
            num_scalar_prefetch=0,
            grid=(nc, steps),
            in_specs=[in_spec] * len(inputs),
            out_specs=out_spec,
        ),
        compiler_params=pltpu.CompilerParams(
            dimension_semantics=("parallel", "arbitrary"),
            vmem_limit_bytes=_VMEM_LIMIT_BYTES),
    )(*inputs)
    total = jnp.sum(partials)

    if scalar_weight is not None:
        total = total * scalar_weight
    if avg_factor is not None:            # reduction == 'mean' here
        total = total / jnp.asarray(avg_factor, jnp.float32)
    elif reduction == 'mean':
        total = total / jnp.float32(n)
    return total.astype(out_dtype)        # 'sum' falls through unscaled


class GaussianFocalLoss:
    """JAX/Pallas port of the PyTorch GaussianFocalLoss module (no learnable params)."""

    def __init__(self, alpha=2.0, gamma=4.0, reduction='mean', loss_weight=1.0):
        self.alpha = alpha
        self.gamma = gamma
        self.reduction = reduction
        self.loss_weight = loss_weight

    def __call__(self, pred, target, weight=None, avg_factor=None,
                 reduction_override=None):
        assert reduction_override in (None, 'none', 'mean', 'sum')
        reduction = reduction_override if reduction_override else self.reduction
        loss = gaussian_focal_loss_tpu(
            pred, target, weight=weight, reduction=reduction,
            avg_factor=avg_factor, alpha=self.alpha, gamma=self.gamma)
        return self.loss_weight * loss


def _reference(pred, target, weight=None, reduction='mean', avg_factor=None,
               alpha=2.0, gamma=4.0):
    """Pure-JAX reference matching the PyTorch module."""
    eps = 1e-12
    pos_w = (target == 1.0).astype(jnp.float32)
    neg_w = (1.0 - target) ** gamma
    pos_loss = -jnp.log(pred + eps) * (1.0 - pred) ** alpha * pos_w
    neg_loss = -jnp.log(1.0 - pred + eps) * (pred ** alpha) * neg_w
    loss = pos_loss + neg_loss
    if weight is not None:
        loss = loss * jnp.asarray(weight, jnp.float32)
    if avg_factor is None:
        if reduction == 'mean':
            return jnp.mean(loss)
        if reduction == 'sum':
            return jnp.sum(loss)
        return loss
    if reduction == 'mean':
        return jnp.sum(loss) / avg_factor
    return loss  # 'none' with avg_factor -> elementwise (matches weight_reduce_loss)


if __name__ == "__main__":
    key = jax.random.PRNGKey(0)
    k1, k2, k3, k4 = jax.random.split(key, 4)

    B, C, H, W = 2, 4, 16, 16
    pred = jax.nn.sigmoid(jax.random.normal(k1, (B, C, H, W), dtype=jnp.float32))
    target = jax.random.uniform(k2, (B, C, H, W), dtype=jnp.float32)
    peak_mask = jax.random.uniform(k3, (B, C, H, W)) > 0.98
    target = jnp.where(peak_mask, 1.0, target * 0.9)
    weight = jax.random.uniform(k4, (B, C, H, W), dtype=jnp.float32)

    loss_fn = GaussianFocalLoss(alpha=2.0, gamma=4.0, reduction='mean', loss_weight=1.0)

    # mean
    out = jax.block_until_ready(loss_fn(pred, target))
    ref = _reference(pred, target, reduction='mean')
    assert jnp.allclose(out, ref, rtol=2e-5, atol=1e-6), (out, ref)

    # sum
    out = jax.block_until_ready(loss_fn(pred, target, reduction_override='sum'))
    ref = _reference(pred, target, reduction='sum')
    assert jnp.allclose(out, ref, rtol=2e-5, atol=1e-5), (out, ref)

    # none (elementwise)
    out = jax.block_until_ready(loss_fn(pred, target, reduction_override='none'))
    ref = _reference(pred, target, reduction='none')
    assert jnp.allclose(out, ref, rtol=2e-5, atol=1e-6)

    # elementwise weight + avg_factor (mean)
    out = jax.block_until_ready(loss_fn(pred, target, weight=weight, avg_factor=37.0))
    ref = _reference(pred, target, weight=weight, reduction='mean', avg_factor=37.0)
    assert jnp.allclose(out, ref, rtol=2e-5, atol=1e-6), (out, ref)

    # scalar weight, sum
    out = jax.block_until_ready(loss_fn(pred, target, weight=0.5, reduction_override='sum'))
    ref = _reference(pred, target, weight=0.5, reduction='sum')
    assert jnp.allclose(out, ref, rtol=2e-5, atol=1e-5), (out, ref)

    # medium shape: exercises ragged edge block (no wrapper-side tile padding),
    # in-kernel masking, and (8,128) resident accumulation
    H2, W2 = 200, 200
    pred2 = jax.nn.sigmoid(jax.random.normal(k1, (B, C, H2, W2), dtype=jnp.float32))
    target2 = jax.random.uniform(k2, (B, C, H2, W2), dtype=jnp.float32) * 0.95
    out = jax.block_until_ready(loss_fn(pred2, target2))
    ref = _reference(pred2, target2, reduction='mean')
    assert jnp.allclose(out, ref, rtol=1e-4, atol=1e-6), (out, ref)

    # non-multiple-of-128 size: forces the <128-element flat pad + rem-lane masking
    pred3 = jax.nn.sigmoid(jax.random.normal(k3, (3, 5, 7, 11), dtype=jnp.float32))
    target3 = jax.random.uniform(k4, (3, 5, 7, 11), dtype=jnp.float32) * 0.95
    out = jax.block_until_ready(loss_fn(pred3, target3, reduction_override='sum'))
    ref = _reference(pred3, target3, reduction='sum')
    assert jnp.allclose(out, ref, rtol=2e-5, atol=1e-5), (out, ref)
    out = jax.block_until_ready(loss_fn(pred3, target3, reduction_override='none'))
    ref = _reference(pred3, target3, reduction='none')
    assert jnp.allclose(out, ref, rtol=2e-5, atol=1e-6)

    print("KERNEL_OK")
</pallas_src>

<mosaic_0001>
module attributes {stable_mosaic.version = 11 : i64} {
  func.func @kernel(%arg0: i32, %arg1: i32, %arg2: memref<16x128xf32, #tpu.memory_space<vmem>>, %arg3: memref<16x128xf32, #tpu.memory_space<vmem>>, %arg4: memref<1x8x128xf32, #tpu.memory_space<vmem>>) attributes {dimension_semantics = [#tpu.dimension_semantics<parallel>, #tpu.dimension_semantics<arbitrary>], iteration_bounds = array<i64: 1, 1>, scalar_prefetch = 0 : i64, scratch_operands = 0 : i64, tpu.core_type = #tpu.core_type<tc>, window_params = [{transform_indices = @transform_0, window_bounds = array<i64: 16, 128>}, {transform_indices = @transform_1, window_bounds = array<i64: 16, 128>}, {transform_indices = @transform_2, window_bounds = array<i64: 1, 8, 128>}]} {
    %c0_i32 = arith.constant 0 : i32
    %0 = arith.cmpi eq, %arg1, %c0_i32 : i32
    %1 = arith.extui %0 : i1 to i32
    %c0_i32_0 = arith.constant 0 : i32
    %2 = arith.cmpi ne, %1, %c0_i32_0 : i32
    scf.if %2 {
      %cst_16 = arith.constant 0.000000e+00 : f32
      %34 = vector.broadcast %cst_16 : f32 to vector<1x8x128xf32>
      %c0_17 = arith.constant 0 : index
      %c0_18 = arith.constant 0 : index
      %c0_19 = arith.constant 0 : index
      %35 = vector.load %arg4[%c0_17, %c0_18, %c0_19] : memref<1x8x128xf32, #tpu.memory_space<vmem>>, vector<1x8x128xf32>
      tpu.vector_store %arg4[%c0_17, %c0_18, %c0_19], %34 {strides = array<i32>} : memref<1x8x128xf32, #tpu.memory_space<vmem>>, vector<1x8x128xf32>,
    } else {
    }
    %c0 = arith.constant 0 : index
    %c0_1 = arith.constant 0 : index
    %3 = vector.load %arg2[%c0, %c0_1] : memref<16x128xf32, #tpu.memory_space<vmem>>, vector<16x128xf32>
    %c0_2 = arith.constant 0 : index
    %c0_3 = arith.constant 0 : index
    %4 = vector.load %arg3[%c0_2, %c0_3] : memref<16x128xf32, #tpu.memory_space<vmem>>, vector<16x128xf32>
    %cst = arith.constant 1.000000e+00 : f32
    %5 = vector.broadcast %cst : f32 to vector<16x128xf32>
    %6 = arith.cmpf oeq, %4, %5 : vector<16x128xf32>
    %cst_4 = arith.constant 1.000000e+00 : f32
    %7 = vector.broadcast %cst_4 : f32 to vector<16x128xf32>
    %8 = arith.subf %7, %3 : vector<16x128xf32>
    %9 = arith.select %6, %3, %8 : vector<16x128xi1>, vector<16x128xf32>
    %cst_5 = arith.constant 1.000000e+00 : f32
    %10 = vector.broadcast %cst_5 : f32 to vector<16x128xf32>
    %11 = arith.subf %10, %3 : vector<16x128xf32>
    %12 = arith.mulf %11, %11 : vector<16x128xf32>
    %13 = arith.mulf %3, %3 : vector<16x128xf32>
    %cst_6 = arith.constant 1.000000e+00 : f32
    %14 = vector.broadcast %cst_6 : f32 to vector<16x128xf32>
    %15 = arith.subf %14, %4 : vector<16x128xf32>
    %16 = arith.mulf %15, %15 : vector<16x128xf32>
    %17 = arith.mulf %16, %16 : vector<16x128xf32>
    %18 = arith.mulf %13, %17 : vector<16x128xf32>
    %19 = arith.select %6, %12, %18 : vector<16x128xi1>, vector<16x128xf32>
    %cst_7 = arith.constant 9.99999996E-13 : f32
    %20 = vector.broadcast %cst_7 : f32 to vector<16x128xf32>
    %21 = arith.addf %9, %20 : vector<16x128xf32>
    %22 = math.log %21 : vector<16x128xf32>
    %cst_8 = arith.constant 0.000000e+00 : f32
    %23 = vector.broadcast %cst_8 : f32 to vector<16x128xf32>
    %24 = arith.subf %23, %22 : vector<16x128xf32>
    %25 = arith.mulf %24, %19 : vector<16x128xf32>
    %c0_9 = arith.constant 0 : index
    %c0_10 = arith.constant 0 : index
    %c0_11 = arith.constant 0 : index
    %26 = vector.load %arg4[%c0_9, %c0_10, %c0_11] : memref<1x8x128xf32, #tpu.memory_space<vmem>>, vector<1x8x128xf32>
    %27 = vector.shape_cast %26 : vector<1x8x128xf32> to vector<8x128xf32>
    %28 = vector.shape_cast %25 : vector<16x128xf32> to vector<2x8x128xf32>
    %cst_12 = arith.constant dense<0.000000e+00> : vector<8x128xf32>
    %29 = vector.multi_reduction <add>, %28, %cst_12 [0] : vector<2x8x128xf32> to vector<8x128xf32>
    %30 = arith.addf %27, %29 : vector<8x128xf32>
    %c0_13 = arith.constant 0 : index
    %c0_14 = arith.constant 0 : index
    %c0_15 = arith.constant 0 : index
    %31 = vector.load %arg4[%c0_13, %c0_14, %c0_15] : memref<1x8x128xf32, #tpu.memory_space<vmem>>, vector<1x8x128xf32>
    %32 = vector.shape_cast %31 : vector<1x8x128xf32> to vector<8x128xf32>
    %33 = vector.shape_cast %30 : vector<8x128xf32> to vector<1x8x128xf32>
    tpu.vector_store %arg4[%c0_13, %c0_14, %c0_15], %33 {strides = array<i32>} : memref<1x8x128xf32, #tpu.memory_space<vmem>>, vector<1x8x128xf32>,
    return
  }
  func.func @transform_0(%arg0: i32, %arg1: i32) -> (i32, i32) {
    %c1_i32 = arith.constant 1 : i32
    %0 = arith.muli %arg0, %c1_i32 : i32
    %1 = arith.addi %0, %arg1 : i32
    %c0_i32 = arith.constant 0 : i32
    %2 = arith.minsi %1, %c0_i32 : i32
    %c0_i32_0 = arith.constant 0 : i32
    %c0_i32_1 = arith.constant 0 : i32
    return %2, %c0_i32_0 : i32, i32
  }
  func.func @transform_1(%arg0: i32, %arg1: i32) -> (i32, i32) {
    %c1_i32 = arith.constant 1 : i32
    %0 = arith.muli %arg0, %c1_i32 : i32
    %1 = arith.addi %0, %arg1 : i32
    %c0_i32 = arith.constant 0 : i32
    %2 = arith.minsi %1, %c0_i32 : i32
    %c0_i32_0 = arith.constant 0 : i32
    %c0_i32_1 = arith.constant 0 : i32
    return %2, %c0_i32_0 : i32, i32
  }
  func.func @transform_2(%arg0: i32, %arg1: i32) -> (i32, i32, i32) {
    %c0_i32 = arith.constant 0 : i32
    %c0_i32_0 = arith.constant 0 : i32
    %c0_i32_1 = arith.constant 0 : i32
    return %arg0, %c0_i32, %c0_i32_0 : i32, i32, i32
  }
}

</mosaic_0001>

<llo_original>
// kernel: tpu_custom_call.1
$region0: #{tpu_custom_call.1}
  #allocation0 [shape = 'u32[]', space=smem, size = 0x4, offset = 0x4, fixed_abs, tag = 'smem constant byte address 0x4 - core index']
  #allocation1 [shape = 'u32[144,128]{1,0:T(1,128)}', space=vmem, size = 0x12000, scoped, tag = 'internal scratch']
  %s0 = inlined_call_operand.hbm [shape: f32[16,128], index: 0, kind: input, shape index: {}]
  %s1 = inlined_call_operand.hbm [shape: f32[16,128], index: 1, kind: input, shape index: {}]
  %s2 = inlined_call_operand.hbm [shape: f32[1,8,128], index: 2, kind: output, shape index: {}]
  %s3 = sld [smem:[#allocation0]]
  $region30: #{tpu_custom_call.1} parent=0
    _
  %s5 = ssub.s32 1, %s3
  %s6 = scalar_select 0, %s5, %s3
  $region1: #{tpu_custom_call.1} parent=0
    #allocation2 [shape = 'u8[8192]{0}', space=vmem, size = 0x2000, scoped, tag = 'input window, operand 0, single buffered']
    #allocation3 [shape = 's32[1]{0}', space=sflag, size = 0x4, scoped, tag = 'scoped memory for tpu_custom_call.1']
    #allocation4 [shape = 's32[1]{0}', space=sflag, size = 0x4, scoped, tag = 'scoped memory for tpu_custom_call.1']
    #allocation5 [shape = 'u8[8192]{0}', space=vmem, size = 0x2000, scoped, tag = 'input window, operand 1, single buffered']
    #allocation6 [shape = 's32[1]{0}', space=sflag, size = 0x4, scoped, tag = 'scoped memory for tpu_custom_call.1']
    #allocation7 [shape = 'u8[4096]{0}', space=vmem, size = 0x1000, scoped, tag = 'output window, operand 0, single buffered']
    %7 = vsyncpa [#allocation3], 0
    %8 = vsyncpa [#allocation6], 0
    %9 = vsyncpa [#allocation4], 0
    // Predicated region
    $region2: #{tpu_custom_call.1} parent=1 // pred_check
      _
    $region3: #{tpu_custom_call.1} parent=1 // pred_check_branch
      %11 = sbr.rel (0) target = $region5
    $region4: #{tpu_custom_call.1} parent=1 // pred_region
      %s12 = sadd.s32 0, 0
      %p13 = scmp.lt.s32.totalorder %s12, 0
      %s14 = scalar_select %p13, %s12, 0
      %s15 = smul.u32 2, %s14
      %s17 = ssub.s32 256, 256
      %18 = vsyncadd [#allocation3], %s17
      %s19 = smul.addr %s15, 128
      %s20 = scalar_lea.hbm %s0, %s19
      %s21 = sshll.u32 [#allocation2], 4
      %s22 = int_to_ptr.vmem [resolvable:$true] %s21
      %27 = dma.hbm_to_vmem [thread:$0]  %s20, 256, %s22, [#allocation3], 128, 128, 8
    $region5: #{tpu_custom_call.1} parent=1 // pred_fallthru
      _
    // Predicated region
    $region6: #{tpu_custom_call.1} parent=1 // pred_check
      _
    $region7: #{tpu_custom_call.1} parent=1 // pred_check_branch
      %29 = sbr.rel (0) target = $region9
    $region8: #{tpu_custom_call.1} parent=1 // pred_region
      %s30 = sadd.s32 0, 0
      %p31 = scmp.lt.s32.totalorder %s30, 0
      %s32 = scalar_select %p31, %s30, 0
      %s33 = smul.u32 2, %s32
      %s35 = ssub.s32 256, 256
      %36 = vsyncadd [#allocation6], %s35
      %s37 = smul.addr %s33, 128
      %s38 = scalar_lea.hbm %s1, %s37
      %s39 = sshll.u32 [#allocation5], 4
      %s40 = int_to_ptr.vmem [resolvable:$true] %s39
      %45 = dma.hbm_to_vmem [thread:$0]  %s38, 256, %s40, [#allocation6], 128, 128, 8
    $region9: #{tpu_custom_call.1} parent=1 // pred_fallthru
      _
    // Predicated region
    $region10: #{tpu_custom_call.1} parent=1 // pred_check
      _
    $region11: #{tpu_custom_call.1} parent=1 // pred_check_branch
      %47 = sbr.rel (0) target = $region13
    $region12: #{tpu_custom_call.1} parent=1 // pred_region
      %48 = dma.done [#allocation3], 256
    $region13: #{tpu_custom_call.1} parent=1 // pred_fallthru
      _
    // Predicated region
    $region14: #{tpu_custom_call.1} parent=1 // pred_check
      _
    $region15: #{tpu_custom_call.1} parent=1 // pred_check_branch
      %50 = sbr.rel (0) target = $region17
    $region16: #{tpu_custom_call.1} parent=1 // pred_region
      %51 = dma.done [#allocation6], 256
    $region17: #{tpu_custom_call.1} parent=1 // pred_fallthru
      _
    %s52 = sadd.s32 0, 0
    %p53 = scmp.lt.s32.totalorder %s52, 0
    %s54 = scalar_select %p53, %s52, 0
    %s55 = smul.u32 2, %s54
    %s56 = sadd.s32 0, 0
    %p57 = scmp.lt.s32.totalorder %s56, 0
    %s58 = scalar_select %p57, %s56, 0
    %s59 = smul.u32 2, %s58
    %p60 = scmp.eq.s32.totalorder 0, 0
    // Predicated region
    $region18: #{tpu_custom_call.1} parent=1 // pred_check
      %p61 = pneg %p60
    $region19: #{tpu_custom_call.1} parent=1 // pred_check_branch
      %63 = sbr.rel (%p61) target = $region21
    $region20: #{tpu_custom_call.1} parent=1 // pred_region
      %64 = vst [vmem:[#allocation7] sm:$0xff] 0.0
    $region21: #{tpu_custom_call.1} parent=1 // pred_fallthru
      _
    %v65 = vld [vmem:[#allocation2] sm:$0xff]
    %v66 = vld [vmem:[#allocation2 + $0x8] sm:$0xff]
    %v67 = vld [vmem:[#allocation5] sm:$0xff]
    %v68 = vld [vmem:[#allocation5 + $0x8] sm:$0xff]
    %vm69 = vcmp.eq.f32.partialorder %v67, 1.0
    %vm70 = vcmp.eq.f32.partialorder %v68, 1.0
    %v71 = vsub.f32 1.0, %v65
    %v72 = vsub.f32 1.0, %v66
    %v73 = vsel %vm69, %v65, %v71
    %v74 = vsel %vm70, %v66, %v72
    %v75 = vmul.f32 %v71, %v71
    %v76 = vmul.f32 %v72, %v72
    %v77 = vmul.f32 %v65, %v65
    %v78 = vmul.f32 %v66, %v66
    %v79 = vsub.f32 1.0, %v67
    %v80 = vsub.f32 1.0, %v68
    %v81 = vmul.f32 %v79, %v79
    %v82 = vmul.f32 %v80, %v80
    %v83 = vmul.f32 %v81, %v81
    %v84 = vmul.f32 %v82, %v82
    %v85 = vmul.f32 %v77, %v83
    %v86 = vmul.f32 %v78, %v84
    %v87 = vsel %vm69, %v75, %v85
    %v88 = vsel %vm70, %v76, %v86
    %v89 = vadd.f32 %v73, 1e-12
    %v90 = vadd.f32 %v74, 1e-12
    %v91 = vlog2.pop %v89
    %v92 = vmul.f32 %v91, 0.6931472
    %v93 = vlog2.pop %v90
    %v94 = vmul.f32 %v93, 0.6931472
    %v95 = vsub.f32 0.0, %v92
    %v96 = vsub.f32 0.0, %v94
    %v97 = vmul.f32 %v95, %v87
    %v98 = vmul.f32 %v96, %v88
    %v99 = vld [vmem:[#allocation7] sm:$0xff]
    %v100 = vadd.f32 %v97, %v98
    %v101 = vadd.f32 %v99, %v100
    %102 = vst [vmem:[#allocation7] sm:$0xff] %v101
    // Predicated region
    $region22: #{tpu_custom_call.1} parent=1 // pred_check
      _
    $region23: #{tpu_custom_call.1} parent=1 // pred_check_branch
      %104 = sbr.rel (0) target = $region25
    $region24: #{tpu_custom_call.1} parent=1 // pred_region
      %s106 = ssub.s32 128, 128
      %107 = vsyncadd [#allocation4], %s106
      %s109 = sshll.u32 [#allocation7], 4
      %s110 = int_to_ptr.vmem [resolvable:$true] %s109
      %112 = dma.vmem_to_hbm [thread:$0]  %s110, 128, %s2, [#allocation4]
    $region25: #{tpu_custom_call.1} parent=1 // pred_fallthru
      _
    // Predicated region
    $region26: #{tpu_custom_call.1} parent=1 // pred_check
      _
    $region27: #{tpu_custom_call.1} parent=1 // pred_check_branch
      %114 = sbr.rel (0) target = $region29
    $region28: #{tpu_custom_call.1} parent=1 // pred_region
      %115 = dma.done [#allocation4], 128
    $region29: #{tpu_custom_call.1} parent=1 // pred_fallthru
      _
    %116 = vsyncpa [#allocation3], 1
    %117 = vsyncpa [#allocation6], 1
    %118 = vsyncpa [#allocation4], 1

</llo_original>
